<compile_context>
chip_gen: v7x
topology: tpu7x:2x2x1
jax: 0.10.0
libtpu: 0.0.40
codegen_flags: <defaults>
</compile_context>

<pallas_src>
import jax
import jax.numpy as jnp
from jax.experimental import pallas as pl
from jax.experimental.pallas import tpu as pltpu


_LANE = 128
_MAX_LANE_WIDTH = 16384                 # cap on flattened lane width (elements)
_SUBLANE_PACK = 32                      # multiple of the sublane pack for f32/bf16/int8
_TARGET_TILE_BYTES = 8 * 1024 * 1024    # ~8 MiB tile: 4 buffers ~= 32 MiB VMEM (fits v7x)
_VMEM_LIMIT_BYTES = 40 * 1024 * 1024    # headroom over 4 tile buffers on every gen
_MIN_KERNEL_BYTES = 1 * 1024 * 1024     # below this, metadata reshape beats kernel overhead


def _copy_kernel(x_ref, o_ref):
    # Identity: move the current VMEM tile from input to output.
    o_ref[...] = x_ref[...]


def _choose_lane_width(n: int) -> int:
    """Largest multiple-of-128 factor of n (capped); 0 if n is not a multiple of 128."""
    if n <= 0 or n % _LANE != 0:
        return 0
    for k in range(min(n, _MAX_LANE_WIDTH) // _LANE, 0, -1):
        w = k * _LANE
        if n % w == 0:
            return w
    return _LANE


def _choose_row_tile(rows: int, lane: int, itemsize: int, tile_bytes: int) -> int:
    """Row-tile height: multiple of the sublane pack, ~tile_bytes per tile."""
    if rows <= 8:
        return rows                        # block equals full dim -> always allowed
    t = tile_bytes // max(1, lane * itemsize)
    t = max(8, min(rows, t))
    if rows >= _SUBLANE_PACK and t >= _SUBLANE_PACK:
        return (t // _SUBLANE_PACK) * _SUBLANE_PACK
    return max(8, (t // 8) * 8)


def _choose_lane_tile(n: int, itemsize: int, tile_bytes: int) -> int:
    """Lane-axis tile for the (1, n) fallback: full dim, or a multiple of 128."""
    target = max(_LANE, tile_bytes // max(1, itemsize))
    if n <= target:
        return n                           # single block equal to full dim -> allowed
    return max(_LANE, (target // _LANE) * _LANE)


def _pallas_copy_2d(x2d: jax.Array, tile_rows: int, tile_cols: int) -> jax.Array:
    """Lane-dense, tiled, pipelined identity copy of a 2-D array."""
    rows, cols = x2d.shape
    itemsize = x2d.dtype.itemsize
    grid = (pl.cdiv(rows, tile_rows), pl.cdiv(cols, tile_cols))

    return pl.pallas_call(
        _copy_kernel,
        out_shape=jax.ShapeDtypeStruct(x2d.shape, x2d.dtype),
        grid_spec=pl.GridSpec(
            grid=grid,
            in_specs=[pl.BlockSpec((tile_rows, tile_cols), lambda i, j: (i, j))],
            out_specs=pl.BlockSpec((tile_rows, tile_cols), lambda i, j: (i, j)),
        ),
        compiler_params=pltpu.CompilerParams(
            # Independent tiles -> megacore-shardable on v7x; pipelined everywhere.
            dimension_semantics=("parallel", "parallel"),
            vmem_limit_bytes=_VMEM_LIMIT_BYTES,
        ),
        # Purely mem-bound: 0 flops, read + write the whole array once each.
        cost_estimate=pl.CostEstimate(
            flops=0,
            transcendentals=0,
            bytes_accessed=2 * rows * cols * itemsize,
        ),
    )(x2d)


def same_forward(
    x: jax.Array,
    *,
    copy: bool = True,
    donate_input: bool = False,
    min_kernel_bytes: int = _MIN_KERNEL_BYTES,
    tile_bytes: int = _TARGET_TILE_BYTES,
) -> jax.Array:
    """JAX/Pallas equivalent of Same.forward: x.squeeze(0).

    copy=False        -> zero-cost metadata squeeze (recommended production path).
    copy=True         -> route the data through the Pallas identity-copy kernel.
    donate_input=True -> caller no longer needs x: the copy buys nothing, so the
                         kernel is skipped and a metadata reshape is returned.
    min_kernel_bytes  -> inputs smaller than this also use the metadata reshape
                         (per-call + per-step overhead cannot be amortized).
    """
    squeezed_shape = x.shape[1:] if (x.ndim >= 1 and x.shape[0] == 1) else x.shape
    nbytes = x.size * x.dtype.itemsize

    # squeeze(0) is pure shape metadata; skip the kernel whenever the copy is
    # not explicitly requested, the buffer is donated, or the input is tiny.
    if (not copy) or donate_input or x.ndim == 0 or x.size == 0 or nbytes < min_kernel_bytes:
        return jnp.reshape(x, squeezed_shape)

    n = x.size
    itemsize = x.dtype.itemsize
    lane = _choose_lane_width(n)
    if lane > 0:
        # Lane-dense path: every vreg lane carries useful data, unmasked stores.
        rows = n // lane
        x2d = x.reshape(rows, lane)
        tile_rows = _choose_row_tile(rows, lane, itemsize, tile_bytes)
        tile_cols = lane
    else:
        # Element count not a multiple of 128: flatten to (1, n) and tile the
        # lane axis in multiple-of-128 chunks -> only the final block is a
        # masked partial store (instead of every store being masked).
        x2d = x.reshape(1, n)
        tile_rows = 1
        tile_cols = _choose_lane_tile(n, itemsize, tile_bytes)

    y2d = _pallas_copy_2d(x2d, tile_rows, tile_cols)
    return y2d.reshape(squeezed_shape)


if __name__ == "__main__":
    key = jax.random.PRNGKey(0)

    # Small NCHW input with leading dim 1 so squeeze(0) actually removes it.
    # min_kernel_bytes=0 forces the kernel even for this tiny test input.
    x = jax.random.normal(key, (1, 4, 16, 16), dtype=jnp.float32)
    y = same_forward(x, min_kernel_bytes=0)
    jax.block_until_ready(y)
    expected = jnp.squeeze(x, axis=0)
    assert y.shape == (4, 16, 16), y.shape
    assert y.dtype == x.dtype
    assert bool(jnp.array_equal(y, expected))

    # squeeze(0) is a no-op when the leading dim != 1.
    x2 = jax.random.normal(jax.random.PRNGKey(1), (2, 4, 16, 16), dtype=jnp.float32)
    y2 = same_forward(x2, min_kernel_bytes=0)
    jax.block_until_ready(y2)
    assert y2.shape == x2.shape
    assert bool(jnp.array_equal(y2, x2))

    # Larger case exercising the pipelined, multi-step row grid (lane-dense path).
    # tile_bytes=1 MiB forces several grid steps at this (modest) test size.
    x3 = jax.random.normal(jax.random.PRNGKey(2), (1, 256, 64, 128), dtype=jnp.float32)
    y3 = same_forward(x3, tile_bytes=1 << 20)
    jax.block_until_ready(y3)
    assert y3.shape == (256, 64, 128)
    assert bool(jnp.array_equal(y3, jnp.squeeze(x3, axis=0)))

    # Irregular size (not a multiple of 128): flattened (1, n), single full-dim block.
    x4 = jax.random.normal(jax.random.PRNGKey(3), (1, 5, 7, 3), dtype=jnp.float32)
    y4 = same_forward(x4, min_kernel_bytes=0)
    jax.block_until_ready(y4)
    assert y4.shape == (5, 7, 3)
    assert bool(jnp.array_equal(y4, jnp.squeeze(x4, axis=0)))

    # Irregular size with several 128-wide lane tiles + a masked partial final block.
    x5 = jax.random.normal(jax.random.PRNGKey(4), (1, 123, 517), dtype=jnp.float32)
    y5 = same_forward(x5, min_kernel_bytes=0, tile_bytes=64 * 1024)
    jax.block_until_ready(y5)
    assert y5.shape == (123, 517)
    assert bool(jnp.array_equal(y5, jnp.squeeze(x5, axis=0)))

    # Donated-input path skips the kernel entirely (metadata reshape only).
    y_don = same_forward(x, donate_input=True)
    jax.block_until_ready(y_don)
    assert bool(jnp.array_equal(y_don, expected))

    # Metadata-only fast path (no kernel) matches as well.
    y_fast = same_forward(x, copy=False)
    jax.block_until_ready(y_fast)
    assert bool(jnp.array_equal(y_fast, expected))

    print("KERNEL_OK")
</pallas_src>

<mosaic_0001>
module attributes {stable_mosaic.version = 11 : i64} {
  func.func @_copy_kernel(%arg0: i32, %arg1: i32, %arg2: memref<1x1024xf32, #tpu.memory_space<vmem>>, %arg3: memref<1x1024xf32, #tpu.memory_space<vmem>>) attributes {dimension_semantics = [#tpu.dimension_semantics<parallel>, #tpu.dimension_semantics<parallel>], iteration_bounds = array<i64: 1, 1>, scalar_prefetch = 0 : i64, scratch_operands = 0 : i64, tpu.core_type = #tpu.core_type<tc>, window_params = [{transform_indices = @transform_0, window_bounds = array<i64: 1, 1024>}, {transform_indices = @transform_1, window_bounds = array<i64: 1, 1024>}]} {
    %c0 = arith.constant 0 : index
    %c0_0 = arith.constant 0 : index
    %0 = vector.load %arg2[%c0, %c0_0] : memref<1x1024xf32, #tpu.memory_space<vmem>>, vector<1x1024xf32>
    %c0_1 = arith.constant 0 : index
    %c0_2 = arith.constant 0 : index
    %1 = vector.load %arg3[%c0_1, %c0_2] : memref<1x1024xf32, #tpu.memory_space<vmem>>, vector<1x1024xf32>
    tpu.vector_store %arg3[%c0_1, %c0_2], %0 {strides = array<i32>} : memref<1x1024xf32, #tpu.memory_space<vmem>>, vector<1x1024xf32>,
    return
  }
  func.func @transform_0(%arg0: i32, %arg1: i32) -> (i32, i32) {
    %c0_i32 = arith.constant 0 : i32
    return %arg0, %arg1 : i32, i32
  }
  func.func @transform_1(%arg0: i32, %arg1: i32) -> (i32, i32) {
    %c0_i32 = arith.constant 0 : i32
    return %arg0, %arg1 : i32, i32
  }
}

</mosaic_0001>

<llo_original>
// kernel: tpu_custom_call.1
$region0: #{tpu_custom_call.1}
  #allocation0 [shape = 'u32[]', space=smem, size = 0x4, offset = 0x4, fixed_abs, tag = 'smem constant byte address 0x4 - core index']
  #allocation1 [shape = 'u32[144,128]{1,0:T(1,128)}', space=vmem, size = 0x12000, scoped, tag = 'internal scratch']
  %s0 = inlined_call_operand.hbm [shape: f32[1,1024], index: 0, kind: input, shape index: {}]
  %s1 = inlined_call_operand.hbm [shape: f32[1,1024], index: 1, kind: output, shape index: {}]
  %s2 = sld [smem:[#allocation0]]
  $region18: #{tpu_custom_call.1} parent=0
    _
  %s4 = ssub.s32 1, %s2
  %s5 = scalar_select 0, %s4, %s2
  $region1: #{tpu_custom_call.1} parent=0
    #allocation2 [shape = 'u8[4096]{0}', space=vmem, size = 0x1000, scoped, tag = 'input window, operand 0, single buffered']
    #allocation3 [shape = 's32[1]{0}', space=sflag, size = 0x4, scoped, tag = 'scoped memory for tpu_custom_call.1']
    #allocation4 [shape = 's32[1]{0}', space=sflag, size = 0x4, scoped, tag = 'scoped memory for tpu_custom_call.1']
    #allocation5 [shape = 'u8[4096]{0}', space=vmem, size = 0x1000, scoped, tag = 'output window, operand 0, single buffered']
    %6 = vsyncpa [#allocation3], 0
    %7 = vsyncpa [#allocation4], 0
    // Predicated region
    $region2: #{tpu_custom_call.1} parent=1 // pred_check
      _
    $region3: #{tpu_custom_call.1} parent=1 // pred_check_branch
      %9 = sbr.rel (0) target = $region5
    $region4: #{tpu_custom_call.1} parent=1 // pred_region
      %s11 = ssub.s32 128, 128
      %12 = vsyncadd [#allocation3], %s11
      %s14 = sshll.u32 [#allocation2], 4
      %s15 = int_to_ptr.vmem [resolvable:$true] %s14
      %17 = dma.hbm_to_vmem [thread:$0]  %s0, 128, %s15, [#allocation3]
    $region5: #{tpu_custom_call.1} parent=1 // pred_fallthru
      _
    // Predicated region
    $region6: #{tpu_custom_call.1} parent=1 // pred_check
      _
    $region7: #{tpu_custom_call.1} parent=1 // pred_check_branch
      %19 = sbr.rel (0) target = $region9
    $region8: #{tpu_custom_call.1} parent=1 // pred_region
      %20 = dma.done [#allocation3], 128
    $region9: #{tpu_custom_call.1} parent=1 // pred_fallthru
      _
    %v21 = vld [vmem:[#allocation2] sm:$0xff]
    %22 = vst [vmem:[#allocation5] sm:$0xff] %v21
    // Predicated region
    $region10: #{tpu_custom_call.1} parent=1 // pred_check
      _
    $region11: #{tpu_custom_call.1} parent=1 // pred_check_branch
      %24 = sbr.rel (0) target = $region13
    $region12: #{tpu_custom_call.1} parent=1 // pred_region
      %s26 = ssub.s32 128, 128
      %27 = vsyncadd [#allocation4], %s26
      %s29 = sshll.u32 [#allocation5], 4
      %s30 = int_to_ptr.vmem [resolvable:$true] %s29
      %32 = dma.vmem_to_hbm [thread:$0]  %s30, 128, %s1, [#allocation4]
    $region13: #{tpu_custom_call.1} parent=1 // pred_fallthru
      _
    // Predicated region
    $region14: #{tpu_custom_call.1} parent=1 // pred_check
      _
    $region15: #{tpu_custom_call.1} parent=1 // pred_check_branch
      %34 = sbr.rel (0) target = $region17
    $region16: #{tpu_custom_call.1} parent=1 // pred_region
      %35 = dma.done [#allocation4], 128
    $region17: #{tpu_custom_call.1} parent=1 // pred_fallthru
      _
    %36 = vsyncpa [#allocation3], 1
    %37 = vsyncpa [#allocation4], 1

</llo_original>
